<compile_context>
chip_gen: v5e
topology: v5e:2x2
jax: 0.10.0
libtpu: 0.0.40
codegen_flags: <defaults>
</compile_context>

<pallas_src>
import functools

import jax
import jax.numpy as jnp
from jax.experimental import pallas as pl
from jax.experimental.pallas import tpu as pltpu


def _round_up(v, m):
    return ((v + m - 1) // m) * m


def _ffn_ln_kernel(x_ref, w1t_ref, w2t_ref, b1_ref, b2_ref, g_ref, beta_ref,
                   o_ref, *, eps, inv_d):
    x = x_ref[...]                                            # (tm, d_in), boundary dtype
    xf = x.astype(jnp.float32)

    # w_1: Conv1d(d_in, d_hid, 1)  ==  x @ W1^T + b1, then ReLU   (MXU, f32 acc)
    h = jnp.dot(x, w1t_ref[...], preferred_element_type=jnp.float32)     # (tm, d_hid)
    h = jnp.maximum(h + b1_ref[...].astype(jnp.float32), 0.0)

    # w_2: Conv1d(d_hid, d_in, 1)  ==  h @ W2^T + b2
    y = jnp.dot(h.astype(w2t_ref.dtype), w2t_ref[...],
                preferred_element_type=jnp.float32)                       # (tm, d_in)
    z = y + b2_ref[...].astype(jnp.float32) + xf                          # + residual

    # TODO(synk): training-mode dropout not implemented (inference: identity).

    # LayerNorm over channels (lane axis) — two-pass centered variance (no cancellation).
    mean = jnp.sum(z, axis=-1, keepdims=True) * inv_d
    zc = z - mean
    var = jnp.sum(zc * zc, axis=-1, keepdims=True) * inv_d
    norm = zc * jax.lax.rsqrt(var + eps)
    out = norm * g_ref[...].astype(jnp.float32) + beta_ref[...].astype(jnp.float32)
    o_ref[...] = out.astype(o_ref.dtype)


def positionwise_ffn_cnn(x, w1, b1, w2, b2, gamma, beta, *, eps=1e-5, tm=None,
                         param_dtype=None):
    """x: (B, T, d_in); w1: (d_hid, d_in); w2: (d_in, d_hid). Returns (B, T, d_in)."""
    B, T, d_in = x.shape
    d_hid, d_in_w = w1.shape
    assert d_in_w == d_in and w2.shape == (d_in, d_hid)
    N = B * T

    if param_dtype is not None:
        # e.g. jnp.bfloat16: halves resident weight VMEM / weight DMA, MXU-native input;
        # accumulation stays f32 inside the kernel.
        w1 = w1.astype(param_dtype)
        w2 = w2.astype(param_dtype)
        b1 = b1.astype(param_dtype)
        b2 = b2.astype(param_dtype)

    # Token-major activation view: free reshape, no HBM transpose.
    x2d = x.reshape(N, d_in)

    # Pre-transpose the (small) weights once; biases / LN params as (1, d) rows.
    w1t = w1.T                      # (d_in, d_hid)
    w2t = w2.T                      # (d_hid, d_in)
    b1r = b1.reshape(1, d_hid)
    b2r = b2.reshape(1, d_in)
    gr = gamma.reshape(1, d_in)
    br = beta.reshape(1, d_in)

    # Degenerate tiny-N case only: pad up to one sublane tile (8 rows).
    if N < 8:
        x2d = jnp.pad(x2d, ((0, 8 - N), (0, 0)))
    n_rows = max(N, 8)

    x_item = jnp.dtype(x.dtype).itemsize
    w_item = jnp.dtype(w1t.dtype).itemsize
    g_item = jnp.dtype(gamma.dtype).itemsize

    if tm is None:
        # Full VMEM working-set accounting (bytes):
        #   fixed:     double-buffered weights + small per-channel params
        #   per token: double-buffered in + out tiles, f32 (d_hid,) intermediate h,
        #              ~3 f32 (d_in,) LayerNorm temporaries.
        fixed = (2 * w_item * (w1t.size + w2t.size + b1r.size + b2r.size)
                 + 2 * g_item * (gr.size + br.size))
        per_tok = 4 * d_in * x_item + 4 * d_hid + 12 * d_in
        vmem_budget = 30 * 1024 * 1024
        io_target = 4 * 1024 * 1024            # token-input bytes per grid step
        tm = min(max(vmem_budget - fixed, 8 * per_tok) // per_tok,
                 max(io_target // (d_in * x_item), 8))
        tm = max(8, (tm // 8) * 8)
    assert tm % 8 == 0 and tm >= 8, "token tile must be a multiple of 8 sublanes"

    # Keep the block inside the array bounds along the sublane axis; the ragged last
    # block (if any) relies on Pallas edge-block semantics (rows independent, OOB
    # writes dropped) instead of a jnp.pad copy of the activation slab.
    tm = min(tm, max(8, (n_rows // 8) * 8))

    # Megacore (v7x): make sure the "parallel" axis has >= 2 steps when possible.
    half = -(-n_rows // 2)
    if n_rows >= 16 and tm > half:
        tm = min(tm, _round_up(half, 8))

    grid = (pl.cdiv(n_rows, tm),)

    out2d = pl.pallas_call(
        functools.partial(_ffn_ln_kernel, eps=eps, inv_d=1.0 / d_in),
        out_shape=jax.ShapeDtypeStruct((n_rows, d_in), x.dtype),
        grid_spec=pltpu.PrefetchScalarGridSpec(
            num_scalar_prefetch=0,
            grid=grid,
            in_specs=[
                pl.BlockSpec((tm, d_in), lambda i: (i, 0)),      # token tile of x
                pl.BlockSpec((d_in, d_hid), lambda i: (0, 0)),   # W1^T (resident)
                pl.BlockSpec((d_hid, d_in), lambda i: (0, 0)),   # W2^T (resident)
                pl.BlockSpec((1, d_hid), lambda i: (0, 0)),      # b1
                pl.BlockSpec((1, d_in), lambda i: (0, 0)),       # b2
                pl.BlockSpec((1, d_in), lambda i: (0, 0)),       # gamma
                pl.BlockSpec((1, d_in), lambda i: (0, 0)),       # beta
            ],
            out_specs=pl.BlockSpec((tm, d_in), lambda i: (i, 0)),
        ),
        compiler_params=pltpu.CompilerParams(
            dimension_semantics=("parallel",),        # shards across v7x TensorCores
            vmem_limit_bytes=40 * 1024 * 1024,        # > v5e's 16 MiB default, < v7x 64 MiB
        ),
    )(x2d, w1t, w2t, b1r, b2r, gr, br)

    return out2d[:N].reshape(B, T, d_in)


def _reference(x, w1, b1, w2, b2, gamma, beta, eps=1e-5):
    # Pure-JAX reference mirroring the PyTorch forward (dropout = identity).
    # w1: (d_hid, d_in), w2: (d_in, d_hid) — Conv1d weights with k=1 squeezed.
    h = jnp.maximum(jnp.einsum("btd,hd->bth", x, w1) + b1, 0.0)
    y = jnp.einsum("bth,dh->btd", h, w2) + b2
    z = y + x
    mean = jnp.mean(z, axis=-1, keepdims=True)
    var = jnp.mean((z - mean) ** 2, axis=-1, keepdims=True)
    return (z - mean) / jnp.sqrt(var + eps) * gamma + beta


if __name__ == "__main__":
    # Module hyperparams (small, consistent with the forward).
    B, T, d_in, d_hid = 2, 8, 16, 32

    key = jax.random.PRNGKey(0)
    kx, k1, k2, k3, k4 = jax.random.split(key, 5)

    x = jax.random.normal(kx, (B, T, d_in), dtype=jnp.float32)

    # Conv1d(d_in, d_hid, 1).weight has shape (d_hid, d_in, 1); stored squeezed.
    w1 = jax.random.normal(k1, (d_hid, d_in), dtype=jnp.float32) * 0.1
    b1 = jax.random.normal(k2, (d_hid,), dtype=jnp.float32) * 0.1
    w2 = jax.random.normal(k3, (d_in, d_hid), dtype=jnp.float32) * 0.1
    b2 = jax.random.normal(k4, (d_in,), dtype=jnp.float32) * 0.1
    gamma = jnp.ones((d_in,), dtype=jnp.float32)
    beta = jnp.zeros((d_in,), dtype=jnp.float32)

    out = positionwise_ffn_cnn(x, w1, b1, w2, b2, gamma, beta)
    out = jax.block_until_ready(out)

    ref = _reference(x, w1, b1, w2, b2, gamma, beta)
    assert out.shape == (B, T, d_in)
    assert jnp.allclose(out, ref, atol=1e-4, rtol=1e-4), "mismatch vs reference"

    print("KERNEL_OK")
</pallas_src>

<mosaic_0001>
module attributes {stable_mosaic.version = 11 : i64} {
  func.func @_ffn_ln_kernel(%arg0: i32, %arg1: memref<8x16xf32, #tpu.memory_space<vmem>>, %arg2: memref<16x32xf32, #tpu.memory_space<vmem>>, %arg3: memref<32x16xf32, #tpu.memory_space<vmem>>, %arg4: memref<1x32xf32, #tpu.memory_space<vmem>>, %arg5: memref<1x16xf32, #tpu.memory_space<vmem>>, %arg6: memref<1x16xf32, #tpu.memory_space<vmem>>, %arg7: memref<1x16xf32, #tpu.memory_space<vmem>>, %arg8: memref<8x16xf32, #tpu.memory_space<vmem>>) attributes {dimension_semantics = [#tpu.dimension_semantics<parallel>], iteration_bounds = array<i64: 2>, scalar_prefetch = 0 : i64, scratch_operands = 0 : i64, tpu.core_type = #tpu.core_type<tc>, window_params = [{transform_indices = @transform_0, window_bounds = array<i64: 8, 16>}, {pipeline_mode = #tpu.pipeline_mode<synchronous>, transform_indices = @transform_1, window_bounds = array<i64: 16, 32>}, {pipeline_mode = #tpu.pipeline_mode<synchronous>, transform_indices = @transform_2, window_bounds = array<i64: 32, 16>}, {pipeline_mode = #tpu.pipeline_mode<synchronous>, transform_indices = @transform_3, window_bounds = array<i64: 1, 32>}, {pipeline_mode = #tpu.pipeline_mode<synchronous>, transform_indices = @transform_4, window_bounds = array<i64: 1, 16>}, {pipeline_mode = #tpu.pipeline_mode<synchronous>, transform_indices = @transform_5, window_bounds = array<i64: 1, 16>}, {pipeline_mode = #tpu.pipeline_mode<synchronous>, transform_indices = @transform_6, window_bounds = array<i64: 1, 16>}, {transform_indices = @transform_7, window_bounds = array<i64: 8, 16>}]} {
    %c0 = arith.constant 0 : index
    %c0_0 = arith.constant 0 : index
    %0 = vector.load %arg1[%c0, %c0_0] : memref<8x16xf32, #tpu.memory_space<vmem>>, vector<8x16xf32>
    %c0_1 = arith.constant 0 : index
    %c0_2 = arith.constant 0 : index
    %1 = vector.load %arg2[%c0_1, %c0_2] : memref<16x32xf32, #tpu.memory_space<vmem>>, vector<16x32xf32>
    %cst = arith.constant dense<0.000000e+00> : vector<8x32xf32>
    %2 = tpu.matmul %0, %1, %cst {dimension_numbers = #tpu.dot_dimension_numbers<[1], [0], [0], [1], [0, 0, 1, 1], [], []>} : vector<8x16xf32>, vector<16x32xf32>, vector<8x32xf32> -> vector<8x32xf32>
    %c0_3 = arith.constant 0 : index
    %c0_4 = arith.constant 0 : index
    %3 = vector.load %arg4[%c0_3, %c0_4] : memref<1x32xf32, #tpu.memory_space<vmem>>, vector<1x32xf32>
    %4 = vector.broadcast %3 : vector<1x32xf32> to vector<8x32xf32>
    %5 = arith.addf %2, %4 : vector<8x32xf32>
    %cst_5 = arith.constant 0.000000e+00 : f32
    %6 = vector.broadcast %cst_5 : f32 to vector<8x32xf32>
    %7 = arith.maximumf %5, %6 : vector<8x32xf32>
    %c0_6 = arith.constant 0 : index
    %c0_7 = arith.constant 0 : index
    %8 = vector.load %arg3[%c0_6, %c0_7] : memref<32x16xf32, #tpu.memory_space<vmem>>, vector<32x16xf32>
    %cst_8 = arith.constant dense<0.000000e+00> : vector<8x16xf32>
    %9 = tpu.matmul %7, %8, %cst_8 {dimension_numbers = #tpu.dot_dimension_numbers<[1], [0], [0], [1], [0, 0, 1, 1], [], []>} : vector<8x32xf32>, vector<32x16xf32>, vector<8x16xf32> -> vector<8x16xf32>
    %c0_9 = arith.constant 0 : index
    %c0_10 = arith.constant 0 : index
    %10 = vector.load %arg5[%c0_9, %c0_10] : memref<1x16xf32, #tpu.memory_space<vmem>>, vector<1x16xf32>
    %11 = vector.broadcast %10 : vector<1x16xf32> to vector<8x16xf32>
    %12 = arith.addf %9, %11 : vector<8x16xf32>
    %13 = arith.addf %12, %0 : vector<8x16xf32>
    %cst_11 = arith.constant dense<0.000000e+00> : vector<8xf32>
    %14 = vector.multi_reduction <add>, %13, %cst_11 [1] : vector<8x16xf32> to vector<8xf32>
    %15 = vector.shape_cast %14 : vector<8xf32> to vector<8x1xf32>
    %cst_12 = arith.constant 6.250000e-02 : f32
    %16 = vector.broadcast %cst_12 : f32 to vector<8x1xf32>
    %17 = arith.mulf %15, %16 : vector<8x1xf32>
    %18 = vector.broadcast %17 : vector<8x1xf32> to vector<8x16xf32>
    %19 = arith.subf %13, %18 : vector<8x16xf32>
    %20 = arith.mulf %19, %19 : vector<8x16xf32>
    %cst_13 = arith.constant dense<0.000000e+00> : vector<8xf32>
    %21 = vector.multi_reduction <add>, %20, %cst_13 [1] : vector<8x16xf32> to vector<8xf32>
    %22 = vector.shape_cast %21 : vector<8xf32> to vector<8x1xf32>
    %cst_14 = arith.constant 6.250000e-02 : f32
    %23 = vector.broadcast %cst_14 : f32 to vector<8x1xf32>
    %24 = arith.mulf %22, %23 : vector<8x1xf32>
    %cst_15 = arith.constant 9.99999974E-6 : f32
    %25 = vector.broadcast %cst_15 : f32 to vector<8x1xf32>
    %26 = arith.addf %24, %25 : vector<8x1xf32>
    %27 = math.rsqrt %26 : vector<8x1xf32>
    %28 = vector.broadcast %27 : vector<8x1xf32> to vector<8x16xf32>
    %29 = arith.mulf %19, %28 : vector<8x16xf32>
    %c0_16 = arith.constant 0 : index
    %c0_17 = arith.constant 0 : index
    %30 = vector.load %arg6[%c0_16, %c0_17] : memref<1x16xf32, #tpu.memory_space<vmem>>, vector<1x16xf32>
    %31 = vector.broadcast %30 : vector<1x16xf32> to vector<8x16xf32>
    %32 = arith.mulf %29, %31 : vector<8x16xf32>
    %c0_18 = arith.constant 0 : index
    %c0_19 = arith.constant 0 : index
    %33 = vector.load %arg7[%c0_18, %c0_19] : memref<1x16xf32, #tpu.memory_space<vmem>>, vector<1x16xf32>
    %34 = vector.broadcast %33 : vector<1x16xf32> to vector<8x16xf32>
    %35 = arith.addf %32, %34 : vector<8x16xf32>
    %c0_20 = arith.constant 0 : index
    %c0_21 = arith.constant 0 : index
    %36 = vector.load %arg8[%c0_20, %c0_21] : memref<8x16xf32, #tpu.memory_space<vmem>>, vector<8x16xf32>
    tpu.vector_store %arg8[%c0_20, %c0_21], %35 {strides = array<i32>} : memref<8x16xf32, #tpu.memory_space<vmem>>, vector<8x16xf32>,
    return
  }
  func.func @transform_0(%arg0: i32) -> (i32, i32) {
    %c0_i32 = arith.constant 0 : i32
    %c0_i32_0 = arith.constant 0 : i32
    return %arg0, %c0_i32 : i32, i32
  }
  func.func @transform_1(%arg0: i32) -> (i32, i32) {
    %c0_i32 = arith.constant 0 : i32
    %c0_i32_0 = arith.constant 0 : i32
    %c0_i32_1 = arith.constant 0 : i32
    return %c0_i32, %c0_i32_0 : i32, i32
  }
  func.func @transform_2(%arg0: i32) -> (i32, i32) {
    %c0_i32 = arith.constant 0 : i32
    %c0_i32_0 = arith.constant 0 : i32
    %c0_i32_1 = arith.constant 0 : i32
    return %c0_i32, %c0_i32_0 : i32, i32
  }
  func.func @transform_3(%arg0: i32) -> (i32, i32) {
    %c0_i32 = arith.constant 0 : i32
    %c0_i32_0 = arith.constant 0 : i32
    %c0_i32_1 = arith.constant 0 : i32
    return %c0_i32, %c0_i32_0 : i32, i32
  }
  func.func @transform_4(%arg0: i32) -> (i32, i32) {
    %c0_i32 = arith.constant 0 : i32
    %c0_i32_0 = arith.constant 0 : i32
    %c0_i32_1 = arith.constant 0 : i32
    return %c0_i32, %c0_i32_0 : i32, i32
  }
  func.func @transform_5(%arg0: i32) -> (i32, i32) {
    %c0_i32 = arith.constant 0 : i32
    %c0_i32_0 = arith.constant 0 : i32
    %c0_i32_1 = arith.constant 0 : i32
    return %c0_i32, %c0_i32_0 : i32, i32
  }
  func.func @transform_6(%arg0: i32) -> (i32, i32) {
    %c0_i32 = arith.constant 0 : i32
    %c0_i32_0 = arith.constant 0 : i32
    %c0_i32_1 = arith.constant 0 : i32
    return %c0_i32, %c0_i32_0 : i32, i32
  }
  func.func @transform_7(%arg0: i32) -> (i32, i32) {
    %c0_i32 = arith.constant 0 : i32
    %c0_i32_0 = arith.constant 0 : i32
    return %arg0, %c0_i32 : i32, i32
  }
}

</mosaic_0001>

<llo_original>
// kernel: tpu_custom_call.1
$region0: #{tpu_custom_call.1}
  #allocation0 [shape = 'u32[]', space=smem, size = 0x4, offset = 0x4, fixed_abs, tag = 'smem constant byte address 0x4 - core index']
  #allocation1 [shape = 'u32[72,128]{1,0:T(1,128)}', space=vmem, size = 0x9000, scoped, tag = 'internal scratch']
  %s0 = inlined_call_operand.vmem [shape: f32[16,16], index: 0, kind: input, shape index: {}]
  %s1 = inlined_call_operand.vmem [shape: f32[16,32], index: 1, kind: input, shape index: {}]
  %s2 = inlined_call_operand.vmem [shape: f32[32,16], index: 2, kind: input, shape index: {}]
  %s3 = inlined_call_operand.vmem [shape: f32[1,32], index: 3, kind: input, shape index: {}]
  %s4 = inlined_call_operand.vmem [shape: f32[1,16], index: 4, kind: input, shape index: {}]
  %s5 = inlined_call_operand.vmem [shape: f32[1,16], index: 5, kind: input, shape index: {}]
  %s6 = inlined_call_operand.vmem [shape: f32[1,16], index: 6, kind: input, shape index: {}]
  %s7 = inlined_call_operand.hbm [shape: f32[16,16], index: 7, kind: output, shape index: {}]
  %s8 = sld [smem:[#allocation0]]
  $region61: #{tpu_custom_call.1} parent=0
    _
  %s10 = ssub.s32 1, %s8
  %s11 = scalar_select 0, %s10, %s8
  $region1: #{tpu_custom_call.1} parent=0
    #allocation2 [shape = 'u8[8192]{0}', space=vmem, size = 0x2000, scoped, tag = 'output window, operand 0']
    #allocation3 [shape = 's32[2]{0}', space=sflag, size = 0x8, scoped, tag = 'scoped memory for tpu_custom_call.1']
    %12 = vsyncpa [#allocation3], 0
    %s13 = scalar_lea.sflag [#allocation3], 1
    %14 = vsyncpa %s13, 0
    loop: start=0, step=1, limit=4
    $region2: #{tpu_custom_call.1} parent=1 // loop_pre_header
      _
    $region3: #{tpu_custom_call.1} parent=1 // loop_header
      %s16 = sphi 0, %s20
      %p17 = scmp.ge.s32.totalorder %s16, 4
      %s26 = sphi 0, %s28
      %s29 = sphi 0, %s26
      %s30 = sphi 0, %s29
      %s46 = sphi 0, %s30
      %s50 = sphi 0, %s50
      %s52 = sphi 0, %s50
      %s53 = sphi 0, %s52
      %s67 = sphi 0, %s53
      %s71 = sphi 0, %s71
      %s73 = sphi 0, %s71
      %s74 = sphi 0, %s73
      %s88 = sphi 0, %s74
      %s92 = sphi 0, %s92
      %s94 = sphi 0, %s92
      %s95 = sphi 0, %s94
      %s109 = sphi 0, %s95
      %s113 = sphi 0, %s113
      %s115 = sphi 0, %s113
      %s116 = sphi 0, %s115
      %s130 = sphi 0, %s116
      %s134 = sphi 0, %s134
      %s136 = sphi 0, %s134
      %s137 = sphi 0, %s136
      %s151 = sphi 0, %s137
      %s155 = sphi 0, %s155
      %s157 = sphi 0, %s155
      %s158 = sphi 0, %s157
      %s172 = sphi 0, %s158
      %s178 = sphi 0, %s180
      %s181 = sphi 0, %s178
      %s182 = sphi 0, %s181
      %s198 = sphi 0, %s182
    $region4: #{tpu_custom_call.1} parent=1 // loop_header_branch
      %19 = sbr.rel (%p17) target = $region8
    $region5: #{tpu_custom_call.1} parent=1 // loop_body
      %s21 = ssub.s32 %s16, 1
      %s22 = ssub.s32 %s16, 2
      %s23 = sadd.s32 %s16, 1
      %s24 = ssub.s32 %s16, %s23
      %p25 = scmp.eq.s32.totalorder %s24, 0
      %s27 = sadd.s32 %s26, 1
      %s28 = scalar_select %p25, %s26, %s27
      %p31 = pneg %p25
      %p32 = scmp.eq.s32.totalorder %s16, 1
      %p33 = por %p31, %p32
      %p34 = scmp.ne.s32.totalorder %s26, %s29
      %p35 = scmp.eq.s32.totalorder %s16, 0
      %p36 = por %p34, %p35
      %p37 = scmp.ne.s32.totalorder %s26, %s29
      %p38 = scmp.eq.s32.totalorder %s21, 1
      %p39 = por %p37, %p38
      %p40 = scmp.ne.s32.totalorder %s29, %s30
      %p41 = scmp.eq.s32.totalorder %s21, 0
      %p42 = por %p40, %p41
      %p43 = scmp.ne.s32.totalorder %s29, %s30
      %p44 = scmp.eq.s32.totalorder %s22, 1
      %p45 = por %p43, %p44
      %p47 = scmp.ne.s32.totalorder %s30, %s46
      %p48 = scmp.eq.s32.totalorder %s22, 0
      %p49 = por %p47, %p48
      %s51 = sadd.s32 %s50, 1
      %p54 = scmp.eq.s32.totalorder %s16, 1
      %p55 = scmp.ne.s32.totalorder %s50, %s52
      %p56 = scmp.eq.s32.totalorder %s16, 0
      %p57 = por %p55, %p56
      %p58 = scmp.ne.s32.totalorder %s50, %s52
      %p59 = scmp.eq.s32.totalorder %s21, 1
      %p60 = por %p58, %p59
      %p61 = scmp.ne.s32.totalorder %s52, %s53
      %p62 = scmp.eq.s32.totalorder %s21, 0
      %p63 = por %p61, %p62
      %p64 = scmp.ne.s32.totalorder %s52, %s53
      %p65 = scmp.eq.s32.totalorder %s22, 1
      %p66 = por %p64, %p65
      %p68 = scmp.ne.s32.totalorder %s53, %s67
      %p69 = scmp.eq.s32.totalorder %s22, 0
      %p70 = por %p68, %p69
      %s72 = sadd.s32 %s71, 1
      %p75 = scmp.eq.s32.totalorder %s16, 1
      %p76 = scmp.ne.s32.totalorder %s71, %s73
      %p77 = scmp.eq.s32.totalorder %s16, 0
      %p78 = por %p76, %p77
      %p79 = scmp.ne.s32.totalorder %s71, %s73
      %p80 = scmp.eq.s32.totalorder %s21, 1
      %p81 = por %p79, %p80
      %p82 = scmp.ne.s32.totalorder %s73, %s74
      %p83 = scmp.eq.s32.totalorder %s21, 0
      %p84 = por %p82, %p83
      %p85 = scmp.ne.s32.totalorder %s73, %s74
      %p86 = scmp.eq.s32.totalorder %s22, 1
      %p87 = por %p85, %p86
      %p89 = scmp.ne.s32.totalorder %s74, %s88
      %p90 = scmp.eq.s32.totalorder %s22, 0
      %p91 = por %p89, %p90
      %s93 = sadd.s32 %s92, 1
      %p96 = scmp.eq.s32.totalorder %s16, 1
      %p97 = scmp.ne.s32.totalorder %s92, %s94
      %p98 = scmp.eq.s32.totalorder %s16, 0
      %p99 = por %p97, %p98
      %p100 = scmp.ne.s32.totalorder %s92, %s94
      %p101 = scmp.eq.s32.totalorder %s21, 1
      %p102 = por %p100, %p101
      %p103 = scmp.ne.s32.totalorder %s94, %s95
      %p104 = scmp.eq.s32.totalorder %s21, 0
      %p105 = por %p103, %p104
      %p106 = scmp.ne.s32.totalorder %s94, %s95
      %p107 = scmp.eq.s32.totalorder %s22, 1
      %p108 = por %p106, %p107
      %p110 = scmp.ne.s32.totalorder %s95, %s109
      %p111 = scmp.eq.s32.totalorder %s22, 0
      %p112 = por %p110, %p111
      %s114 = sadd.s32 %s113, 1
      %p117 = scmp.eq.s32.totalorder %s16, 1
      %p118 = scmp.ne.s32.totalorder %s113, %s115
      %p119 = scmp.eq.s32.totalorder %s16, 0
      %p120 = por %p118, %p119
      %p121 = scmp.ne.s32.totalorder %s113, %s115
      %p122 = scmp.eq.s32.totalorder %s21, 1
      %p123 = por %p121, %p122
      %p124 = scmp.ne.s32.totalorder %s115, %s116
      %p125 = scmp.eq.s32.totalorder %s21, 0
      %p126 = por %p124, %p125
      %p127 = scmp.ne.s32.totalorder %s115, %s116
      %p128 = scmp.eq.s32.totalorder %s22, 1
      %p129 = por %p127, %p128
      %p131 = scmp.ne.s32.totalorder %s116, %s130
      %p132 = scmp.eq.s32.totalorder %s22, 0
      %p133 = por %p131, %p132
      %s135 = sadd.s32 %s134, 1
      %p138 = scmp.eq.s32.totalorder %s16, 1
      %p139 = scmp.ne.s32.totalorder %s134, %s136
      %p140 = scmp.eq.s32.totalorder %s16, 0
      %p141 = por %p139, %p140
      %p142 = scmp.ne.s32.totalorder %s134, %s136
      %p143 = scmp.eq.s32.totalorder %s21, 1
      %p144 = por %p142, %p143
      %p145 = scmp.ne.s32.totalorder %s136, %s137
      %p146 = scmp.eq.s32.totalorder %s21, 0
      %p147 = por %p145, %p146
      %p148 = scmp.ne.s32.totalorder %s136, %s137
      %p149 = scmp.eq.s32.totalorder %s22, 1
      %p150 = por %p148, %p149
      %p152 = scmp.ne.s32.totalorder %s137, %s151
      %p153 = scmp.eq.s32.totalorder %s22, 0
      %p154 = por %p152, %p153
      %s156 = sadd.s32 %s155, 1
      %p159 = scmp.eq.s32.totalorder %s16, 1
      %p160 = scmp.ne.s32.totalorder %s155, %s157
      %p161 = scmp.eq.s32.totalorder %s16, 0
      %p162 = por %p160, %p161
      %p163 = scmp.ne.s32.totalorder %s155, %s157
      %p164 = scmp.eq.s32.totalorder %s21, 1
      %p165 = por %p163, %p164
      %p166 = scmp.ne.s32.totalorder %s157, %s158
      %p167 = scmp.eq.s32.totalorder %s21, 0
      %p168 = por %p166, %p167
      %p169 = scmp.ne.s32.totalorder %s157, %s158
      %p170 = scmp.eq.s32.totalorder %s22, 1
      %p171 = por %p169, %p170
      %p173 = scmp.ne.s32.totalorder %s158, %s172
      %p174 = scmp.eq.s32.totalorder %s22, 0
      %p175 = por %p173, %p174
      %s176 = ssub.s32 %s16, %s23
      %p177 = scmp.eq.s32.totalorder %s176, 0
      %s179 = sadd.s32 %s178, 1
      %s180 = scalar_select %p177, %s178, %s179
      %p183 = pneg %p177
      %p184 = scmp.eq.s32.totalorder %s16, 1
      %p185 = por %p183, %p184
      %p186 = scmp.ne.s32.totalorder %s178, %s181
      %p187 = scmp.eq.s32.totalorder %s16, 0
      %p188 = por %p186, %p187
      %p189 = scmp.ne.s32.totalorder %s178, %s181
      %p190 = scmp.eq.s32.totalorder %s21, 1
      %p191 = por %p189, %p190
      %p192 = scmp.ne.s32.totalorder %s181, %s182
      %p193 = scmp.eq.s32.totalorder %s21, 0
      %p194 = por %p192, %p193
      %p195 = scmp.ne.s32.totalorder %s181, %s182
      %p196 = scmp.eq.s32.totalorder %s22, 1
      %p197 = por %p195, %p196
      %p199 = scmp.ne.s32.totalorder %s182, %s198
      %p200 = scmp.eq.s32.totalorder %s22, 0
      %p201 = por %p199, %p200
      %p202 = scmp.le.s32.totalorder 1, %s16
      %p203 = scmp.lt.s32.totalorder %s16, 3
      %p204 = pnand %p202, %p203
      %p205 = pneg %p204
      // Predicated region
      $region9: #{tpu_custom_call.1} parent=5 // pred_check
        _
      $region10: #{tpu_custom_call.1} parent=5 // pred_check_branch
        %207 = sbr.rel (%p204) target = $region12
      $region11: #{tpu_custom_call.1} parent=5 // pred_region
        %s208 = ssub.s32 %s16, 1
        // Predicated region
        $region13: #{tpu_custom_call.1} parent=11 // pred_check
          %p209 = pneg %p63
        $region14: #{tpu_custom_call.1} parent=11 // pred_check_branch
          %211 = sbr.rel (%p209) target = $region16
        $region15: #{tpu_custom_call.1} parent=11 // pred_region
          _
        $region16: #{tpu_custom_call.1} parent=11 // pred_fallthru
          _
        // Predicated region
        $region17: #{tpu_custom_call.1} parent=11 // pred_check
          %p212 = pneg %p84
        $region18: #{tpu_custom_call.1} parent=11 // pred_check_branch
          %214 = sbr.rel (%p212) target = $region20
        $region19: #{tpu_custom_call.1} parent=11 // pred_region
          _
        $region20: #{tpu_custom_call.1} parent=11 // pred_fallthru
          _
        // Predicated region
        $region21: #{tpu_custom_call.1} parent=11 // pred_check
          %p215 = pneg %p105
        $region22: #{tpu_custom_call.1} parent=11 // pred_check_branch
          %217 = sbr.rel (%p215) target = $region24
        $region23: #{tpu_custom_call.1} parent=11 // pred_region
          _
        $region24: #{tpu_custom_call.1} parent=11 // pred_fallthru
          _
        // Predicated region
        $region25: #{tpu_custom_call.1} parent=11 // pred_check
          %p218 = pneg %p126
        $region26: #{tpu_custom_call.1} parent=11 // pred_check_branch
          %220 = sbr.rel (%p218) target = $region28
        $region27: #{tpu_custom_call.1} parent=11 // pred_region
          _
        $region28: #{tpu_custom_call.1} parent=11 // pred_fallthru
          _
        // Predicated region
        $region29: #{tpu_custom_call.1} parent=11 // pred_check
          %p221 = pneg %p147
        $region30: #{tpu_custom_call.1} parent=11 // pred_check_branch
          %223 = sbr.rel (%p221) target = $region32
        $region31: #{tpu_custom_call.1} parent=11 // pred_region
          _
        $region32: #{tpu_custom_call.1} parent=11 // pred_fallthru
          _
        // Predicated region
        $region33: #{tpu_custom_call.1} parent=11 // pred_check
          %p224 = pneg %p168
        $region34: #{tpu_custom_call.1} parent=11 // pred_check_branch
          %226 = sbr.rel (%p224) target = $region36
        $region35: #{tpu_custom_call.1} parent=11 // pred_region
          _
        $region36: #{tpu_custom_call.1} parent=11 // pred_fallthru
          _
      $region12: #{tpu_custom_call.1} parent=5 // pred_fallthru
        _
      %p227 = scmp.lt.s32.totalorder %s16, 2
      // Predicated region
      $region37: #{tpu_custom_call.1} parent=5 // pred_check
        %p228 = pneg %p227
      $region38: #{tpu_custom_call.1} parent=5 // pred_check_branch
        %230 = sbr.rel (%p228) target = $region40
      $region39: #{tpu_custom_call.1} parent=5 // pred_region
        // Predicated region
        $region41: #{tpu_custom_call.1} parent=39 // pred_check
          %p231 = pneg %p36
        $region42: #{tpu_custom_call.1} parent=39 // pred_check_branch
          %233 = sbr.rel (%p231) target = $region44
        $region43: #{tpu_custom_call.1} parent=39 // pred_region
          %p234 = scmp.lt.s32.totalorder %s16, 1
          %s235 = scalar_select %p234, %s16, 1
          %s236 = smul.addr %s235, 8
          %s237 = scalar_lea.vmem %s0, %s236
        $region44: #{tpu_custom_call.1} parent=39 // pred_fallthru
          _
      $region40: #{tpu_custom_call.1} parent=5 // pred_fallthru
        _
      %p238 = scmp.le.s32.totalorder 1, %s16
      %p239 = scmp.lt.s32.totalorder %s16, 3
      %p240 = pnand %p238, %p239
      %p241 = pneg %p240
      // Predicated region
      $region45: #{tpu_custom_call.1} parent=5 // pred_check
        _
      $region46: #{tpu_custom_call.1} parent=5 // pred_check_branch
        %243 = sbr.rel (%p240) target = $region48
      $region47: #{tpu_custom_call.1} parent=5 // pred_region
        %s244 = ssub.s32 %s16, 1
        %p245 = scmp.lt.s32.totalorder %s21, 1
        %s246 = scalar_select %p245, %s21, 1
        %s247 = smul.addr %s246, 8
        %s248 = scalar_lea.vmem %s0, %s247
        %p249 = pneg %p42
        %p250 = pneg %p39
        %p251 = pneg %p63
        %p252 = pneg %p60
        %p253 = pneg %p84
        %p254 = pneg %p81
        %p255 = pneg %p105
        %p256 = pneg %p102
        %p257 = pneg %p126
        %p258 = pneg %p123
        %p259 = pneg %p147
        %p260 = pneg %p144
        %p261 = pneg %p168
        %p262 = pneg %p165
        %p263 = pneg %p194
        %p264 = pneg %p191
        %s265 = sand.u32 %s181, 1
        %s266 = scalar_lea.sflag [#allocation3], %s265
        %s267 = sand.u32 %s181, 1
        %s268 = smul.addr %s267, 8
        %s269 = scalar_lea.vmem [#allocation2], %s268
        %p270 = scmp.lt.s32.totalorder %s21, 1
        %s271 = scalar_select %p270, %s21, 1
        %s272 = smul.addr %s271, 8
        %s273 = scalar_lea.vmem %s0, %s272
        %v274 = vld [vmem:[%s273] sm:$0xff]
        %v275 = vld [vmem:[%s1] sm:$0xff]
        %v276 = vld [vmem:[%s1 + $0x8] sm:$0xff]
        %v277 = vld [vmem:[%s3] sm:$0x1]
        %v279 = vperm.slane %v277, 0
        %vm281 = vcmask 130048
        %v283 = vsel %vm281, %v274, 0
        %285 = vmatpush.msra.mxu0 0.0
        %286 = vmatpush.msra.mxu0 0.0
        %287 = vmatpush.msra.mxu0 0.0
        %288 = vmatpush.msra.mxu0 0.0
        %289 = vmatpush.msra.mxu0 0.0
        %290 = vmatpush.msra.mxu0 0.0
        %291 = vmatpush.msra.mxu0 0.0
        %292 = vmatpush.msra.mxu0 0.0
        %293 = vmatpush.msra.mxu0 0.0
        %294 = vmatpush.msra.mxu0 0.0
        %295 = vmatpush.msra.mxu0 0.0
        %296 = vmatpush.msra.mxu0 0.0
        %297 = vmatpush.msra.mxu0 0.0
        %298 = vmatpush.msra.mxu0 0.0
        %299 = vmatpush.msra.mxu0 %v276
        %300 = vmatpush.msra.mxu0 %v275
        %301 = vmatmul.f32.gmra.mxu0 %v283
        %v302 = vpop.f32.mrf.mxu0
        %v303 = vadd.f32 %v279, %v302
        %304 = vdwg.mxu0
        %v305 = vmax.f32 %v303, 0.0
        %v306 = vld [vmem:[%s2] sm:$0xff]
        %v307 = vld [vmem:[%s2 + $0x8] sm:$0xff]
        %v308 = vld [vmem:[%s2 + $0x10] sm:$0xff]
        %v309 = vld [vmem:[%s2 + $0x18] sm:$0xff]
        %v310 = vld [vmem:[%s4] sm:$0x1]
        %v312 = vperm.slane %v310, 0
        %vm314 = vcmask 261120
        %v316 = vsel %vm314, %v305, 0
        %318 = vmatpush.msra.mxu0 0.0
        %319 = vmatpush.msra.mxu0 0.0
        %320 = vmatpush.msra.mxu0 0.0
        %321 = vmatpush.msra.mxu0 0.0
        %322 = vmatpush.msra.mxu0 0.0
        %323 = vmatpush.msra.mxu0 0.0
        %324 = vmatpush.msra.mxu0 0.0
        %325 = vmatpush.msra.mxu0 0.0
        %326 = vmatpush.msra.mxu0 0.0
        %327 = vmatpush.msra.mxu0 0.0
        %328 = vmatpush.msra.mxu0 0.0
        %329 = vmatpush.msra.mxu0 0.0
        %330 = vmatpush.msra.mxu0 %v309
        %331 = vmatpush.msra.mxu0 %v308
        %332 = vmatpush.msra.mxu0 %v307
        %333 = vmatpush.msra.mxu0 %v306
        %334 = vmatmul.f32.gmra.mxu0 %v316
        %v335 = vpop.f32.mrf.mxu0
        %v336 = vadd.f32 %v312, %v335
        %337 = vdwg.mxu0
        %v338 = vadd.f32 %v336, %v274
        %v339 = vsel %vm281, %v338, 0.0
        %340 = vadd.xlane.f32.xlu0 %v339
        %v341 = vpop.xlane.xlu0 %340
        %v342 = vmul.f32 %v341, 0.0625
        %v343 = vsub.f32 %v338, %v342
        %v344 = vmul.f32 %v343, %v343
        %v345 = vsel %vm281, %v344, 0.0
        %346 = vadd.xlane.f32.xlu0 %v345
        %v347 = vpop.xlane.xlu0 %346
        %v348 = vmul.f32 %v347, 0.0625
        %v349 = vadd.f32 %v348, 1e-05
        %v350 = vrsqrt.pop %v349
        %v351 = vmul.f32 %v350, %v349
        %v352 = vmul.f32 %v351, %v350
        %v353 = vmul.f32 0.5, %v352
        %v354 = vsub.f32 1.5, %v353
        %v355 = vmul.f32 %v350, %v354
        %vm356 = vweird.f32 %v349
        %vm357 = vweird.f32 %v350
        %vm358 = vmor %vm356, %vm357
        %v359 = vsel %vm358, %v350, %v355
        %v360 = vmul.f32 %v343, %v359
        %v361 = vld [vmem:[%s5] sm:$0x1]
        %v363 = vperm.slane %v361, 0
        %v365 = vmul.f32 %v360, %v363
        %v366 = vld [vmem:[%s6] sm:$0x1]
        %v368 = vperm.slane %v366, 0
        %v370 = vadd.f32 %v365, %v368
        %371 = vst.msk [vmem:[%s269] sm:$0xff] %vm281, %v370
        %s372 = sand.u32 %s181, 1
        %s373 = scalar_lea.sflag [#allocation3], %s372
        %s374 = sand.u32 %s181, 1
        %s375 = smul.addr %s374, 8
        %s376 = scalar_lea.vmem [#allocation2], %s375
        // Predicated region
        $region49: #{tpu_custom_call.1} parent=47 // pred_check
          %p377 = pneg %p191
        $region50: #{tpu_custom_call.1} parent=47 // pred_check_branch
          %379 = sbr.rel (%p377) target = $region52
        $region51: #{tpu_custom_call.1} parent=47 // pred_region
          %381 = vsyncadd %s373, 0
          %s382 = smul.addr %s21, 8
          %s383 = scalar_lea.hbm %s7, %s382
          %s385 = sshll.u32 %s376, 4
          %s386 = int_to_ptr.vmem [resolvable:$true] %s385
          %s387 = sshll.u32 %s383, 4
          %s388 = int_to_ptr.hbm [resolvable:$true] %s387
          %390 = dma.vmem_to_hbm [thread:$0]  %s386, 128, %s388, %s373
        $region52: #{tpu_custom_call.1} parent=47 // pred_fallthru
          _
      $region48: #{tpu_custom_call.1} parent=5 // pred_fallthru
        _
      %p391 = scmp.le.s32.totalorder 2, %s16
      // Predicated region
      $region53: #{tpu_custom_call.1} parent=5 // pred_check
        %p392 = pneg %p391
      $region54: #{tpu_custom_call.1} parent=5 // pred_check_branch
        %394 = sbr.rel (%p392) target = $region56
      $region55: #{tpu_custom_call.1} parent=5 // pred_region
        %s395 = ssub.s32 %s16, 2
        // Predicated region
        $region57: #{tpu_custom_call.1} parent=55 // pred_check
          %p396 = pneg %p197
        $region58: #{tpu_custom_call.1} parent=55 // pred_check_branch
          %398 = sbr.rel (%p396) target = $region60
        $region59: #{tpu_custom_call.1} parent=55 // pred_region
          %s399 = sand.u32 %s182, 1
          %s400 = scalar_lea.sflag [#allocation3], %s399
          %s401 = sand.u32 %s182, 1
          %s402 = smul.addr %s401, 8
          %s403 = scalar_lea.vmem [#allocation2], %s402
          %405 = dma.done %s400, 128
        $region60: #{tpu_custom_call.1} parent=55 // pred_fallthru
          _
      $region56: #{tpu_custom_call.1} parent=5 // pred_fallthru
        _
    $region6: #{tpu_custom_call.1} parent=1 // loop_footer
      %s20 = sadd.s32 1, %s16
    $region7: #{tpu_custom_call.1} parent=1 // loop_footer_branch
      %15 = sbr.rel target = $region3
    $region8: #{tpu_custom_call.1} parent=1 // loop_exit
      _
    %406 = vsyncpa [#allocation3], 1
    %s407 = scalar_lea.sflag [#allocation3], 1
    %408 = vsyncpa %s407, 1

</llo_original>
